<compile_context>
chip_gen: v7x
topology: tpu7x:2x2x1
jax: 0.10.0
libtpu: 0.0.40
codegen_flags: <defaults>
</compile_context>

<pallas_src>
import jax
import jax.numpy as jnp
from jax.experimental import pallas as pl
from jax.experimental.pallas import tpu as pltpu

LANES = 128


def _linear_kernel(w_ref, b_ref, x_ref, o_ref):
    # w_ref: SMEM (2,) f32    b_ref: SMEM (1,) f32
    # x_ref: VMEM (2, tr, 128)   o_ref: VMEM (tr, 128)
    w0 = w_ref[0]
    w1 = w_ref[1]
    b = b_ref[0]

    # Full-tile dense FMA on the VPU; compute in f32 regardless of input dtype.
    x0 = x_ref[0].astype(jnp.float32)   # (tr, 128) plane: feature 0
    x1 = x_ref[1].astype(jnp.float32)   # (tr, 128) plane: feature 1
    o_ref[...] = (x0 * w0 + x1 * w1 + b).astype(o_ref.dtype)


def linear_pallas(x, weight, bias, *, block_rows=4096, min_pallas_rows=4096):
    """y = x @ weight.T + bias   (weight: (1, 2), bias: (1,))."""
    B, in_features = x.shape
    out_features = weight.shape[0]

    w_flat = weight.reshape(-1).astype(jnp.float32)   # (2,)  -> SMEM scalars
    b_flat = bias.reshape(-1).astype(jnp.float32)     # (1,)  -> SMEM scalar

    # Small-batch fast path: a 2-wide FMA is microseconds of fixed kernel
    # overhead for nanoseconds of work - let XLA fuse it.
    if B < min_pallas_rows:
        y = x.astype(jnp.float32) @ w_flat.reshape(in_features, out_features)
        return (y + b_flat).astype(x.dtype)

    # Pad batch up to a multiple of 128 lanes, then do the ONE relayout pass
    # that also yields dense per-feature planes (2, R, 128).
    R = pl.cdiv(B, LANES)
    Bp = R * LANES
    if Bp != B:
        x = jnp.pad(x, ((0, Bp - B), (0, 0)))
    x_planes = x.T.reshape(in_features, R, LANES)

    tr = min(block_rows, R)          # block_rows is a multiple of 8; tr==R ok too
    grid = (pl.cdiv(R, tr),)         # ragged last block handled by Pallas

    y_planes = pl.pallas_call(
        _linear_kernel,
        out_shape=jax.ShapeDtypeStruct((R, LANES), x.dtype),
        grid_spec=pl.GridSpec(
            grid=grid,
            in_specs=[
                pl.BlockSpec(memory_space=pltpu.MemorySpace.SMEM),      # weight
                pl.BlockSpec(memory_space=pltpu.MemorySpace.SMEM),      # bias
                pl.BlockSpec((in_features, tr, LANES), lambda i: (0, i, 0)),
            ],
            out_specs=pl.BlockSpec((tr, LANES), lambda i: (i, 0)),
        ),
        compiler_params=pltpu.CompilerParams(
            dimension_semantics=("parallel",),          # megacore sharding on v7x
            vmem_limit_bytes=32 * 1024 * 1024,          # ~12 MB actual footprint
        ),
    )(w_flat, b_flat, x_planes)

    # (R,128) -> (Bp,) is a free contiguous reshape; slice off padding.
    return y_planes.reshape(Bp)[:B].reshape(B, out_features)


def reference_linear(x, weight, bias):
    return x @ weight.T + bias


if __name__ == "__main__":
    key = jax.random.PRNGKey(0)
    k_x, k_w, k_b, k_x2 = jax.random.split(key, 4)

    IN, OUT = 2, 1
    # Deterministic init matching nn.Linear's U(-1/sqrt(in), 1/sqrt(in)) range.
    bound = 1.0 / jnp.sqrt(jnp.float32(IN))
    weight = jax.random.uniform(k_w, (OUT, IN), jnp.float32, -bound, bound)
    bias = jax.random.uniform(k_b, (OUT,), jnp.float32, -bound, bound)

    # 1) Tiny demo batch (module's natural usage) -> fused-XLA fast path.
    B_small = 8
    x_small = jax.random.normal(k_x, (B_small, IN), jnp.float32)
    y_small = linear_pallas(x_small, weight, bias)
    jax.block_until_ready(y_small)
    assert y_small.shape == (B_small, OUT)
    assert jnp.allclose(y_small, reference_linear(x_small, weight, bias),
                        atol=1e-5, rtol=1e-5)

    # 2) Force the Pallas path with a small block so the test exercises
    #    padding, a ragged last block, and a multi-step "parallel" grid
    #    (data stays tiny: 25000 x 2 f32 = ~200 KB).
    B_big = 25000
    x_big = jax.random.normal(k_x2, (B_big, IN), jnp.float32)
    y_big = linear_pallas(x_big, weight, bias, block_rows=64, min_pallas_rows=0)
    jax.block_until_ready(y_big)
    assert y_big.shape == (B_big, OUT)
    assert jnp.allclose(y_big, reference_linear(x_big, weight, bias),
                        atol=1e-5, rtol=1e-5)

    print("KERNEL_OK")
</pallas_src>

<mosaic_0001>
module attributes {stable_mosaic.version = 11 : i64} {
  func.func @_linear_kernel(%arg0: i32, %arg1: memref<2xf32, #tpu.memory_space<smem>>, %arg2: memref<1xf32, #tpu.memory_space<smem>>, %arg3: memref<2x64x128xf32, #tpu.memory_space<vmem>>, %arg4: memref<64x128xf32, #tpu.memory_space<vmem>>) attributes {dimension_semantics = [#tpu.dimension_semantics<parallel>], iteration_bounds = array<i64: 4>, scalar_prefetch = 0 : i64, scratch_operands = 0 : i64, tpu.core_type = #tpu.core_type<tc>, window_params = [{transform_indices = @transform_0, window_bounds = array<i64: 2>}, {transform_indices = @transform_1, window_bounds = array<i64: 1>}, {transform_indices = @transform_2, window_bounds = array<i64: 2, 64, 128>}, {transform_indices = @transform_3, window_bounds = array<i64: 64, 128>}]} {
    %c0 = arith.constant 0 : index
    %0 = memref.load %arg1[%c0] : memref<2xf32, #tpu.memory_space<smem>>
    %c1 = arith.constant 1 : index
    %1 = memref.load %arg1[%c1] : memref<2xf32, #tpu.memory_space<smem>>
    %c0_0 = arith.constant 0 : index
    %2 = memref.load %arg2[%c0_0] : memref<1xf32, #tpu.memory_space<smem>>
    %c0_1 = arith.constant 0 : index
    %c0_2 = arith.constant 0 : index
    %c0_3 = arith.constant 0 : index
    %3 = vector.load %arg3[%c0_1, %c0_2, %c0_3] : memref<2x64x128xf32, #tpu.memory_space<vmem>>, vector<1x64x128xf32>
    %4 = vector.shape_cast %3 : vector<1x64x128xf32> to vector<64x128xf32>
    %c1_4 = arith.constant 1 : index
    %c0_5 = arith.constant 0 : index
    %c0_6 = arith.constant 0 : index
    %5 = vector.load %arg3[%c1_4, %c0_5, %c0_6] : memref<2x64x128xf32, #tpu.memory_space<vmem>>, vector<1x64x128xf32>
    %6 = vector.shape_cast %5 : vector<1x64x128xf32> to vector<64x128xf32>
    %7 = vector.broadcast %0 : f32 to vector<64x128xf32>
    %8 = arith.mulf %4, %7 : vector<64x128xf32>
    %9 = vector.broadcast %1 : f32 to vector<64x128xf32>
    %10 = arith.mulf %6, %9 : vector<64x128xf32>
    %11 = arith.addf %8, %10 : vector<64x128xf32>
    %12 = vector.broadcast %2 : f32 to vector<64x128xf32>
    %13 = arith.addf %11, %12 : vector<64x128xf32>
    %c0_7 = arith.constant 0 : index
    %c0_8 = arith.constant 0 : index
    %14 = vector.load %arg4[%c0_7, %c0_8] : memref<64x128xf32, #tpu.memory_space<vmem>>, vector<64x128xf32>
    tpu.vector_store %arg4[%c0_7, %c0_8], %13 {strides = array<i32>} : memref<64x128xf32, #tpu.memory_space<vmem>>, vector<64x128xf32>,
    return
  }
  func.func @transform_0(%arg0: i32) -> i32 {
    %c0_i32 = arith.constant 0 : i32
    %c0_i32_0 = arith.constant 0 : i32
    return %c0_i32 : i32
  }
  func.func @transform_1(%arg0: i32) -> i32 {
    %c0_i32 = arith.constant 0 : i32
    %c0_i32_0 = arith.constant 0 : i32
    return %c0_i32 : i32
  }
  func.func @transform_2(%arg0: i32) -> (i32, i32, i32) {
    %c0_i32 = arith.constant 0 : i32
    %c0_i32_0 = arith.constant 0 : i32
    %c0_i32_1 = arith.constant 0 : i32
    return %c0_i32, %arg0, %c0_i32_0 : i32, i32, i32
  }
  func.func @transform_3(%arg0: i32) -> (i32, i32) {
    %c0_i32 = arith.constant 0 : i32
    %c0_i32_0 = arith.constant 0 : i32
    return %arg0, %c0_i32 : i32, i32
  }
}

</mosaic_0001>

<llo_original>
// kernel: tpu_custom_call.1
$region0: #{tpu_custom_call.1}
  #allocation0 [shape = 'u32[]', space=smem, size = 0x4, offset = 0x4, fixed_abs, tag = 'smem constant byte address 0x4 - core index']
  #allocation1 [shape = 'u32[144,128]{1,0:T(1,128)}', space=vmem, size = 0x12000, scoped, tag = 'internal scratch']
  #allocation2 [shape = 'f32[1]{0:T(128)S(6)}', space=smem, size = 0x200, scoped, tag = 'scoped memory for tpu_custom_call.1']
  %s0 = inlined_call_operand.vmem [shape: f32[2], index: 0, kind: input, shape index: {}]
  %s1 = inlined_call_operand.<no memory space> [shape: f32[1], index: 1, kind: input, shape index: {}]
  %s2 = inlined_call_operand.vmem [shape: f32[2,196,128], index: 2, kind: input, shape index: {}]
  %s3 = inlined_call_operand.hbm [shape: f32[196,128], index: 3, kind: output, shape index: {}]
  %s4 = sld [smem:[#allocation0]]
  $region101: #{tpu_custom_call.1} parent=0
    _
  %s6 = ssub.s32 1, %s4
  %s7 = scalar_select 0, %s6, %s4
  %8 = sst [smem:[#allocation2]] %s1
  $region1: #{tpu_custom_call.1} parent=0
    #allocation3 [shape = 'u8[512]{0}', space=smem, size = 0x200, scoped, tag = 'input window, operand 0, single buffered']
    #allocation4 [shape = 's32[2]{0}', space=sflag, size = 0x8, scoped, tag = 'scoped memory for tpu_custom_call.1']
    #allocation5 [shape = 's32[2]{0}', space=sflag, size = 0x8, scoped, tag = 'scoped memory for tpu_custom_call.1']
    #allocation6 [shape = 'u8[131072]{0}', space=vmem, size = 0x20000, scoped, tag = 'input window, operand 2']
    #allocation7 [shape = 'u8[65536]{0}', space=vmem, size = 0x10000, scoped, tag = 'output window, operand 0']
    %9 = vsyncpa [#allocation5], 0
    %10 = vsyncpa [#allocation4], 0
    %s11 = scalar_lea.sflag [#allocation4], 1
    %12 = vsyncpa %s11, 0
    loop: start=0, step=1, limit=6
    $region2: #{tpu_custom_call.1} parent=1 // loop_pre_header
      _
    $region3: #{tpu_custom_call.1} parent=1 // loop_header
      %s14 = sphi 0, %s18
      %p15 = scmp.ge.s32.totalorder %s14, 6
      %s22 = sphi 0, %s22
      %s24 = sphi 0, %s22
      %s25 = sphi 0, %s24
      %s39 = sphi 0, %s25
      %s43 = sphi 0, %s43
      %s45 = sphi 0, %s43
      %s46 = sphi 0, %s45
      %s60 = sphi 0, %s46
      %s66 = sphi 0, %s68
      %s69 = sphi 0, %s66
      %s70 = sphi 0, %s69
      %s86 = sphi 0, %s70
      %s92 = sphi 0, %s94
      %s95 = sphi 0, %s92
      %s96 = sphi 0, %s95
      %s112 = sphi 0, %s96
    $region4: #{tpu_custom_call.1} parent=1 // loop_header_branch
      %17 = sbr.rel (%p15) target = $region8
    $region5: #{tpu_custom_call.1} parent=1 // loop_body
      %s19 = ssub.s32 %s14, 1
      %s20 = ssub.s32 %s14, 2
      %s21 = sadd.s32 %s14, 1
      %s23 = sadd.s32 %s22, 1
      %p26 = scmp.eq.s32.totalorder %s14, 3
      %p27 = scmp.ne.s32.totalorder %s22, %s24
      %p28 = scmp.eq.s32.totalorder %s14, 0
      %p29 = por %p27, %p28
      %p30 = scmp.ne.s32.totalorder %s22, %s24
      %p31 = scmp.eq.s32.totalorder %s19, 3
      %p32 = por %p30, %p31
      %p33 = scmp.ne.s32.totalorder %s24, %s25
      %p34 = scmp.eq.s32.totalorder %s19, 0
      %p35 = por %p33, %p34
      %p36 = scmp.ne.s32.totalorder %s24, %s25
      %p37 = scmp.eq.s32.totalorder %s20, 3
      %p38 = por %p36, %p37
      %p40 = scmp.ne.s32.totalorder %s25, %s39
      %p41 = scmp.eq.s32.totalorder %s20, 0
      %p42 = por %p40, %p41
      %s44 = sadd.s32 %s43, 1
      %p47 = scmp.eq.s32.totalorder %s14, 3
      %p48 = scmp.ne.s32.totalorder %s43, %s45
      %p49 = scmp.eq.s32.totalorder %s14, 0
      %p50 = por %p48, %p49
      %p51 = scmp.ne.s32.totalorder %s43, %s45
      %p52 = scmp.eq.s32.totalorder %s19, 3
      %p53 = por %p51, %p52
      %p54 = scmp.ne.s32.totalorder %s45, %s46
      %p55 = scmp.eq.s32.totalorder %s19, 0
      %p56 = por %p54, %p55
      %p57 = scmp.ne.s32.totalorder %s45, %s46
      %p58 = scmp.eq.s32.totalorder %s20, 3
      %p59 = por %p57, %p58
      %p61 = scmp.ne.s32.totalorder %s46, %s60
      %p62 = scmp.eq.s32.totalorder %s20, 0
      %p63 = por %p61, %p62
      %s64 = ssub.s32 %s14, %s21
      %p65 = scmp.eq.s32.totalorder %s64, 0
      %s67 = sadd.s32 %s66, 1
      %s68 = scalar_select %p65, %s66, %s67
      %p71 = pneg %p65
      %p72 = scmp.eq.s32.totalorder %s14, 3
      %p73 = por %p71, %p72
      %p74 = scmp.ne.s32.totalorder %s66, %s69
      %p75 = scmp.eq.s32.totalorder %s14, 0
      %p76 = por %p74, %p75
      %p77 = scmp.ne.s32.totalorder %s66, %s69
      %p78 = scmp.eq.s32.totalorder %s19, 3
      %p79 = por %p77, %p78
      %p80 = scmp.ne.s32.totalorder %s69, %s70
      %p81 = scmp.eq.s32.totalorder %s19, 0
      %p82 = por %p80, %p81
      %p83 = scmp.ne.s32.totalorder %s69, %s70
      %p84 = scmp.eq.s32.totalorder %s20, 3
      %p85 = por %p83, %p84
      %p87 = scmp.ne.s32.totalorder %s70, %s86
      %p88 = scmp.eq.s32.totalorder %s20, 0
      %p89 = por %p87, %p88
      %s90 = ssub.s32 %s14, %s21
      %p91 = scmp.eq.s32.totalorder %s90, 0
      %s93 = sadd.s32 %s92, 1
      %s94 = scalar_select %p91, %s92, %s93
      %p97 = pneg %p91
      %p98 = scmp.eq.s32.totalorder %s14, 3
      %p99 = por %p97, %p98
      %p100 = scmp.ne.s32.totalorder %s92, %s95
      %p101 = scmp.eq.s32.totalorder %s14, 0
      %p102 = por %p100, %p101
      %p103 = scmp.ne.s32.totalorder %s92, %s95
      %p104 = scmp.eq.s32.totalorder %s19, 3
      %p105 = por %p103, %p104
      %p106 = scmp.ne.s32.totalorder %s95, %s96
      %p107 = scmp.eq.s32.totalorder %s19, 0
      %p108 = por %p106, %p107
      %p109 = scmp.ne.s32.totalorder %s95, %s96
      %p110 = scmp.eq.s32.totalorder %s20, 3
      %p111 = por %p109, %p110
      %p113 = scmp.ne.s32.totalorder %s96, %s112
      %p114 = scmp.eq.s32.totalorder %s20, 0
      %p115 = por %p113, %p114
      %p116 = scmp.le.s32.totalorder 1, %s14
      %p117 = scmp.lt.s32.totalorder %s14, 5
      %p118 = pnand %p116, %p117
      %p119 = pneg %p118
      // Predicated region
      $region9: #{tpu_custom_call.1} parent=5 // pred_check
        _
      $region10: #{tpu_custom_call.1} parent=5 // pred_check_branch
        %121 = sbr.rel (%p118) target = $region12
      $region11: #{tpu_custom_call.1} parent=5 // pred_region
        %s122 = ssub.s32 %s14, 1
        // Predicated region
        $region13: #{tpu_custom_call.1} parent=11 // pred_check
          %p123 = pneg %p35
        $region14: #{tpu_custom_call.1} parent=11 // pred_check_branch
          %125 = sbr.rel (%p123) target = $region16
        $region15: #{tpu_custom_call.1} parent=11 // pred_region
          %s127 = ssub.s32 16, 16
          %128 = vsyncadd [#allocation5], %s127
          %s130 = sshll.u32 %s0, 4
          %s131 = int_to_ptr.vmem [resolvable:$true] %s130
          %133 = dma.vmem_to_smem %s131, 16, [#allocation3], [#allocation5]
        $region16: #{tpu_custom_call.1} parent=11 // pred_fallthru
          _
        // Predicated region
        $region17: #{tpu_custom_call.1} parent=11 // pred_check
          %p134 = pneg %p56
        $region18: #{tpu_custom_call.1} parent=11 // pred_check_branch
          %136 = sbr.rel (%p134) target = $region20
        $region19: #{tpu_custom_call.1} parent=11 // pred_region
          _
        $region20: #{tpu_custom_call.1} parent=11 // pred_fallthru
          _
      $region12: #{tpu_custom_call.1} parent=5 // pred_fallthru
        _
      %p137 = scmp.lt.s32.totalorder %s14, 4
      // Predicated region
      $region21: #{tpu_custom_call.1} parent=5 // pred_check
        %p138 = pneg %p137
      $region22: #{tpu_custom_call.1} parent=5 // pred_check_branch
        %140 = sbr.rel (%p138) target = $region24
      $region23: #{tpu_custom_call.1} parent=5 // pred_region
        // Predicated region
        $region25: #{tpu_custom_call.1} parent=23 // pred_check
          %p141 = pneg %p76
        $region26: #{tpu_custom_call.1} parent=23 // pred_check_branch
          %143 = sbr.rel (%p141) target = $region28
        $region27: #{tpu_custom_call.1} parent=23 // pred_region
          %s144 = sand.u32 %s66, 1
          %s145 = sand.u32 %s66, 1
          %s146 = smul.addr %s145, 128
          %s147 = scalar_lea.vmem [#allocation6], %s146
          %s148 = smul.u32 8, %s14
          %s149 = ssub.s32 25, %s148
          %p150 = scmp.lt.s32.totalorder %s149, 8
          %s151 = scalar_select %p150, %s149, 8
          %s152 = smul.u32 256, %s151
          %p153 = scmp.ne.s32.totalorder 0, %s152
          %s154 = smul.addr %s148, 8
          %s155 = scalar_lea.vmem %s2, %s154
          // Predicated region
          $region29: #{tpu_custom_call.1} parent=27 // pred_check
            %p156 = pneg %p153
          $region30: #{tpu_custom_call.1} parent=27 // pred_check_branch
            %158 = sbr.rel (%p156) target = $region32
          $region31: #{tpu_custom_call.1} parent=27 // pred_region
            // Predicated region
            $region33: #{tpu_custom_call.1} parent=31 // pred_check
              _
            $region34: #{tpu_custom_call.1} parent=31 // pred_check_branch
              %160 = sbr.rel (0) target = $region36
            $region35: #{tpu_custom_call.1} parent=31 // pred_region
              // Predicated region
              $region55: #{tpu_custom_call.1} parent=35 // pred_check
                _
              $region56: #{tpu_custom_call.1} parent=35 // pred_check_branch
                %241 = sbr.rel (0) target = $region58
              $region57: #{tpu_custom_call.1} parent=35 // pred_region
                %s242 = sshrl.u32 %s151, 3
                // While loop
                $region59: #{tpu_custom_call.1} parent=57 // loop_pre_header
                  _
                $region60: #{tpu_custom_call.1} parent=57 // loop_header
                  %s244 = sphi 0, %s246
                  %p245 = scmp.ge.s32.totalorder %s244, %s242
                  %s249 = sphi 0, %s286
                  %s250 = sphi %s155, %s289
                  %s251 = sphi %s147, %s290
                $region61: #{tpu_custom_call.1} parent=57 // loop_header_branch
                  %248 = sbr.rel (%p245) target = $region65
                $region62: #{tpu_custom_call.1} parent=57 // loop_body
                  %v252 = vld [vmem:[%s250] sm:$0xff]
                  %253 = vst [vmem:[%s251] sm:$0xff] %v252
                  %v254 = vld [vmem:[%s250 + $0x8] sm:$0xff]
                  %255 = vst [vmem:[%s251 + $0x8] sm:$0xff] %v254
                  %v256 = vld [vmem:[%s250 + $0x10] sm:$0xff]
                  %257 = vst [vmem:[%s251 + $0x10] sm:$0xff] %v256
                  %v258 = vld [vmem:[%s250 + $0x18] sm:$0xff]
                  %259 = vst [vmem:[%s251 + $0x18] sm:$0xff] %v258
                  %v260 = vld [vmem:[%s250 + $0x20] sm:$0xff]
                  %261 = vst [vmem:[%s251 + $0x20] sm:$0xff] %v260
                  %v262 = vld [vmem:[%s250 + $0x28] sm:$0xff]
                  %263 = vst [vmem:[%s251 + $0x28] sm:$0xff] %v262
                  %v264 = vld [vmem:[%s250 + $0x30] sm:$0xff]
                  %265 = vst [vmem:[%s251 + $0x30] sm:$0xff] %v264
                  %v266 = vld [vmem:[%s250 + $0x38] sm:$0xff]
                  %267 = vst [vmem:[%s251 + $0x38] sm:$0xff] %v266
                  %v268 = vld [vmem:[%s250 + $0xc8] sm:$0xff]
                  %269 = vst [vmem:[%s251 + $0x40] sm:$0xff] %v268
                  %v270 = vld [vmem:[%s250 + $0xd0] sm:$0xff]
                  %271 = vst [vmem:[%s251 + $0x48] sm:$0xff] %v270
                  %v272 = vld [vmem:[%s250 + $0xd8] sm:$0xff]
                  %273 = vst [vmem:[%s251 + $0x50] sm:$0xff] %v272
                  %v274 = vld [vmem:[%s250 + $0xe0] sm:$0xff]
                  %275 = vst [vmem:[%s251 + $0x58] sm:$0xff] %v274
                  %v276 = vld [vmem:[%s250 + $0xe8] sm:$0xff]
                  %277 = vst [vmem:[%s251 + $0x60] sm:$0xff] %v276
                  %v278 = vld [vmem:[%s250 + $0xf0] sm:$0xff]
                  %279 = vst [vmem:[%s251 + $0x68] sm:$0xff] %v278
                  %v280 = vld [vmem:[%s250 + $0xf8] sm:$0xff]
                  %281 = vst [vmem:[%s251 + $0x70] sm:$0xff] %v280
                  %v282 = vld [vmem:[%s250 + $0x100] sm:$0xff]
                  %283 = vst [vmem:[%s251 + $0x78] sm:$0xff] %v282
                  %s284 = sadd.s32 1, %s249
                  %p285 = scmp.ge.s32.totalorder %s284, %s242
                  %s286 = scalar_select %p285, 0, %s284
                  %s287 = smul.u32 %s286, 64
                  %s288 = smul.u32 %s286, 64
                  %s289 = scalar_lea.vmem %s155, %s287
                  %s290 = scalar_lea.vmem %s147, %s288 [#allocation6]
                $region63: #{tpu_custom_call.1} parent=57 // loop_footer
                  %s246 = sadd.s32 %s244, 1
                $region64: #{tpu_custom_call.1} parent=57 // loop_footer_branch
                  %243 = sbr.rel target = $region60
                $region65: #{tpu_custom_call.1} parent=57 // loop_exit
                  _
                %s291 = sshrl.u32 %s151, 3
                %s292 = sand.u32 %s151, 7
                %s293 = smul.u32 %s291, 8
                %s294 = smul.u32 8, %s293
                %s295 = scalar_lea.vmem %s155, %s294
                %s296 = smul.u32 8, %s293
                %s297 = scalar_lea.vmem %s147, %s296 [#allocation6]
                // While loop
                $region66: #{tpu_custom_call.1} parent=57 // loop_pre_header
                  _
                $region67: #{tpu_custom_call.1} parent=57 // loop_header
                  %s299 = sphi 0, %s301
                  %p300 = scmp.ge.s32.totalorder %s299, %s292
                  %s304 = sphi 0, %s313
                  %s305 = sphi %s295, %s316
                  %s306 = sphi %s297, %s317
                $region68: #{tpu_custom_call.1} parent=57 // loop_header_branch
                  %303 = sbr.rel (%p300) target = $region72
                $region69: #{tpu_custom_call.1} parent=57 // loop_body
                  %v307 = vld [vmem:[%s305] sm:$0xff]
                  %308 = vst [vmem:[%s306] sm:$0xff] %v307
                  %v309 = vld [vmem:[%s305 + $0xc8] sm:$0xff]
                  %310 = vst [vmem:[%s306 + $0x40] sm:$0xff] %v309
                  %s311 = sadd.s32 1, %s304
                  %p312 = scmp.ge.s32.totalorder %s311, %s292
                  %s313 = scalar_select %p312, 0, %s311
                  %s314 = smul.u32 %s313, 8
                  %s315 = smul.u32 %s313, 8
                  %s316 = scalar_lea.vmem %s295, %s314
                  %s317 = scalar_lea.vmem %s297, %s315 [#allocation6]
                $region70: #{tpu_custom_call.1} parent=57 // loop_footer
                  %s301 = sadd.s32 %s299, 1
                $region71: #{tpu_custom_call.1} parent=57 // loop_footer_branch
                  %298 = sbr.rel target = $region67
                $region72: #{tpu_custom_call.1} parent=57 // loop_exit
                  _
              $region58: #{tpu_custom_call.1} parent=35 // pred_fallthru
                _
              // Predicated region
              $region73: #{tpu_custom_call.1} parent=35 // pred_check
                _
              $region74: #{tpu_custom_call.1} parent=35 // pred_check_branch
                %319 = sbr.rel target = $region76
              $region75: #{tpu_custom_call.1} parent=35 // pred_region
                _
              $region76: #{tpu_custom_call.1} parent=35 // pred_fallthru
                _
            $region36: #{tpu_custom_call.1} parent=31 // pred_fallthru
              _
            // Predicated region
            $region37: #{tpu_custom_call.1} parent=31 // pred_check
              _
            $region38: #{tpu_custom_call.1} parent=31 // pred_check_branch
              %162 = sbr.rel target = $region40
            $region39: #{tpu_custom_call.1} parent=31 // pred_region
              %s164 = sshrl.u32 %s151, 3
              // While loop
              $region41: #{tpu_custom_call.1} parent=39 // loop_pre_header
                _
              $region42: #{tpu_custom_call.1} parent=39 // loop_header
                %s166 = sphi 0, %s168
                %p167 = scmp.ge.s32.totalorder %s166, %s164
                %s171 = sphi 0, %s208
                %s172 = sphi %s155, %s211
                %s173 = sphi %s147, %s212
              $region43: #{tpu_custom_call.1} parent=39 // loop_header_branch
                %170 = sbr.rel (%p167) target = $region47
              $region44: #{tpu_custom_call.1} parent=39 // loop_body
                %v174 = vld [vmem:[%s172] sm:$0xff]
                %175 = vst [vmem:[%s173] sm:$0xff] %v174
                %v176 = vld [vmem:[%s172 + $0x8] sm:$0xff]
                %177 = vst [vmem:[%s173 + $0x8] sm:$0xff] %v176
                %v178 = vld [vmem:[%s172 + $0x10] sm:$0xff]
                %179 = vst [vmem:[%s173 + $0x10] sm:$0xff] %v178
                %v180 = vld [vmem:[%s172 + $0x18] sm:$0xff]
                %181 = vst [vmem:[%s173 + $0x18] sm:$0xff] %v180
                %v182 = vld [vmem:[%s172 + $0x20] sm:$0xff]
                %183 = vst [vmem:[%s173 + $0x20] sm:$0xff] %v182
                %v184 = vld [vmem:[%s172 + $0x28] sm:$0xff]
                %185 = vst [vmem:[%s173 + $0x28] sm:$0xff] %v184
                %v186 = vld [vmem:[%s172 + $0x30] sm:$0xff]
                %187 = vst [vmem:[%s173 + $0x30] sm:$0xff] %v186
                %v188 = vld [vmem:[%s172 + $0x38] sm:$0xff]
                %189 = vst [vmem:[%s173 + $0x38] sm:$0xff] %v188
                %v190 = vld [vmem:[%s172 + $0xc8] sm:$0xff]
                %191 = vst [vmem:[%s173 + $0x40] sm:$0xff] %v190
                %v192 = vld [vmem:[%s172 + $0xd0] sm:$0xff]
                %193 = vst [vmem:[%s173 + $0x48] sm:$0xff] %v192
                %v194 = vld [vmem:[%s172 + $0xd8] sm:$0xff]
                %195 = vst [vmem:[%s173 + $0x50] sm:$0xff] %v194
                %v196 = vld [vmem:[%s172 + $0xe0] sm:$0xff]
                %197 = vst [vmem:[%s173 + $0x58] sm:$0xff] %v196
                %v198 = vld [vmem:[%s172 + $0xe8] sm:$0xff]
                %199 = vst [vmem:[%s173 + $0x60] sm:$0xff] %v198
                %v200 = vld [vmem:[%s172 + $0xf0] sm:$0xff]
                %201 = vst [vmem:[%s173 + $0x68] sm:$0xff] %v200
                %v202 = vld [vmem:[%s172 + $0xf8] sm:$0xff]
                %203 = vst [vmem:[%s173 + $0x70] sm:$0xff] %v202
                %v204 = vld [vmem:[%s172 + $0x100] sm:$0xff]
                %205 = vst [vmem:[%s173 + $0x78] sm:$0xff] %v204
                %s206 = sadd.s32 1, %s171
                %p207 = scmp.ge.s32.totalorder %s206, %s164
                %s208 = scalar_select %p207, 0, %s206
                %s209 = smul.u32 %s208, 64
                %s210 = smul.u32 %s208, 64
                %s211 = scalar_lea.vmem %s155, %s209
                %s212 = scalar_lea.vmem %s147, %s210 [#allocation6]
              $region45: #{tpu_custom_call.1} parent=39 // loop_footer
                %s168 = sadd.s32 %s166, 1
              $region46: #{tpu_custom_call.1} parent=39 // loop_footer_branch
                %165 = sbr.rel target = $region42
              $region47: #{tpu_custom_call.1} parent=39 // loop_exit
                _
              %s213 = sshrl.u32 %s151, 3
              %s214 = sand.u32 %s151, 7
              %s215 = smul.u32 %s213, 8
              %s216 = smul.u32 8, %s215
              %s217 = scalar_lea.vmem %s155, %s216
              %s218 = smul.u32 8, %s215
              %s219 = scalar_lea.vmem %s147, %s218 [#allocation6]
              // While loop
              $region48: #{tpu_custom_call.1} parent=39 // loop_pre_header
                _
              $region49: #{tpu_custom_call.1} parent=39 // loop_header
                %s221 = sphi 0, %s223
                %p222 = scmp.ge.s32.totalorder %s221, %s214
                %s226 = sphi 0, %s235
                %s227 = sphi %s217, %s238
                %s228 = sphi %s219, %s239
              $region50: #{tpu_custom_call.1} parent=39 // loop_header_branch
                %225 = sbr.rel (%p222) target = $region54
              $region51: #{tpu_custom_call.1} parent=39 // loop_body
                %v229 = vld [vmem:[%s227] sm:$0xff]
                %230 = vst [vmem:[%s228] sm:$0xff] %v229
                %v231 = vld [vmem:[%s227 + $0xc8] sm:$0xff]
                %232 = vst [vmem:[%s228 + $0x40] sm:$0xff] %v231
                %s233 = sadd.s32 1, %s226
                %p234 = scmp.ge.s32.totalorder %s233, %s214
                %s235 = scalar_select %p234, 0, %s233
                %s236 = smul.u32 %s235, 8
                %s237 = smul.u32 %s235, 8
                %s238 = scalar_lea.vmem %s217, %s236
                %s239 = scalar_lea.vmem %s219, %s237 [#allocation6]
              $region52: #{tpu_custom_call.1} parent=39 // loop_footer
                %s223 = sadd.s32 %s221, 1
              $region53: #{tpu_custom_call.1} parent=39 // loop_footer_branch
                %220 = sbr.rel target = $region49
              $region54: #{tpu_custom_call.1} parent=39 // loop_exit
                _
            $region40: #{tpu_custom_call.1} parent=31 // pred_fallthru
              _
          $region32: #{tpu_custom_call.1} parent=27 // pred_fallthru
            _
          %320 = vnop
        $region28: #{tpu_custom_call.1} parent=23 // pred_fallthru
          _
      $region24: #{tpu_custom_call.1} parent=5 // pred_fallthru
        _
      %p321 = scmp.le.s32.totalorder 1, %s14
      %p322 = scmp.lt.s32.totalorder %s14, 5
      %p323 = pnand %p321, %p322
      %p324 = pneg %p323
      // Predicated region
      $region77: #{tpu_custom_call.1} parent=5 // pred_check
        _
      $region78: #{tpu_custom_call.1} parent=5 // pred_check_branch
        %326 = sbr.rel (%p323) target = $region80
      $region79: #{tpu_custom_call.1} parent=5 // pred_region
        %s327 = ssub.s32 %s14, 1
        // Predicated region
        $region81: #{tpu_custom_call.1} parent=79 // pred_check
          %p328 = pneg %p35
        $region82: #{tpu_custom_call.1} parent=79 // pred_check_branch
          %330 = sbr.rel (%p328) target = $region84
        $region83: #{tpu_custom_call.1} parent=79 // pred_region
          %331 = dma.done [#allocation5], 16
        $region84: #{tpu_custom_call.1} parent=79 // pred_fallthru
          _
        %s332 = sand.u32 %s69, 1
        %s333 = sand.u32 %s69, 1
        %s334 = smul.addr %s333, 128
        %s335 = scalar_lea.vmem [#allocation6], %s334
        // Predicated region
        $region85: #{tpu_custom_call.1} parent=79 // pred_check
          %p336 = pneg %p82
        $region86: #{tpu_custom_call.1} parent=79 // pred_check_branch
          %338 = sbr.rel (%p336) target = $region88
        $region87: #{tpu_custom_call.1} parent=79 // pred_region
          _
        $region88: #{tpu_custom_call.1} parent=79 // pred_fallthru
          _
        %339 = sfence
        %p340 = pneg %p35
        %p341 = pneg %p32
        %p342 = pneg %p56
        %p343 = pneg %p53
        %s344 = sand.u32 %s69, 1
        %s345 = sand.u32 %s69, 1
        %s346 = smul.addr %s345, 128
        %s347 = scalar_lea.vmem [#allocation6], %s346
        %p348 = pneg %p82
        %p349 = pneg %p79
        %p350 = pneg %p108
        %p351 = pneg %p105
        %s352 = sand.u32 %s95, 1
        %s353 = scalar_lea.sflag [#allocation4], %s352
        %s354 = sand.u32 %s95, 1
        %s355 = smul.addr %s354, 64
        %s356 = scalar_lea.vmem [#allocation7], %s355
        %s357 = smul.u32 8, %s19
        %s358 = ssub.s32 25, %s357
        %p359 = scmp.lt.s32.totalorder %s358, 8
        %s360 = scalar_select %p359, %s358, 8
        %s361 = smul.u32 256, %s360
        %s362 = smul.u32 8, %s19
        %s363 = ssub.s32 25, %s362
        %p364 = scmp.lt.s32.totalorder %s363, 8
        %s365 = scalar_select %p364, %s363, 8
        %s366 = smul.u32 128, %s365
        %s367 = sld [smem:[#allocation3]]
        %s368 = sld [smem:[#allocation3 + $0x1]]
        %s369 = sld [smem:[#allocation2]]
        %v370 = vld [vmem:[%s335] sm:$0xff]
        %v371 = vld [vmem:[%s335 + $0x8] sm:$0xff]
        %v372 = vld [vmem:[%s335 + $0x10] sm:$0xff]
        %v373 = vld [vmem:[%s335 + $0x18] sm:$0xff]
        %v374 = vld [vmem:[%s335 + $0x20] sm:$0xff]
        %v375 = vld [vmem:[%s335 + $0x28] sm:$0xff]
        %v376 = vld [vmem:[%s335 + $0x30] sm:$0xff]
        %v377 = vld [vmem:[%s335 + $0x38] sm:$0xff]
        %s378 = scalar_lea.vmem %s335, 64 [#allocation6]
        %v379 = vld [vmem:[%s378] sm:$0xff]
        %v380 = vld [vmem:[%s378 + $0x8] sm:$0xff]
        %v381 = vld [vmem:[%s378 + $0x10] sm:$0xff]
        %v382 = vld [vmem:[%s378 + $0x18] sm:$0xff]
        %v383 = vld [vmem:[%s378 + $0x20] sm:$0xff]
        %v384 = vld [vmem:[%s378 + $0x28] sm:$0xff]
        %v385 = vld [vmem:[%s378 + $0x30] sm:$0xff]
        %v386 = vld [vmem:[%s378 + $0x38] sm:$0xff]
        %v387 = vstv %s367
        %v388 = vmul.f32 %v370, %v387
        %v389 = vmul.f32 %v371, %v387
        %v390 = vmul.f32 %v372, %v387
        %v391 = vmul.f32 %v373, %v387
        %v392 = vmul.f32 %v374, %v387
        %v393 = vmul.f32 %v375, %v387
        %v394 = vmul.f32 %v376, %v387
        %v395 = vmul.f32 %v377, %v387
        %v396 = vstv %s368
        %v397 = vmul.f32 %v379, %v396
        %v398 = vmul.f32 %v380, %v396
        %v399 = vmul.f32 %v381, %v396
        %v400 = vmul.f32 %v382, %v396
        %v401 = vmul.f32 %v383, %v396
        %v402 = vmul.f32 %v384, %v396
        %v403 = vmul.f32 %v385, %v396
        %v404 = vmul.f32 %v386, %v396
        %v405 = vadd.f32 %v388, %v397
        %v406 = vadd.f32 %v389, %v398
        %v407 = vadd.f32 %v390, %v399
        %v408 = vadd.f32 %v391, %v400
        %v409 = vadd.f32 %v392, %v401
        %v410 = vadd.f32 %v393, %v402
        %v411 = vadd.f32 %v394, %v403
        %v412 = vadd.f32 %v395, %v404
        %v413 = vstv %s369
        %v414 = vadd.f32 %v405, %v413
        %v415 = vadd.f32 %v406, %v413
        %v416 = vadd.f32 %v407, %v413
        %v417 = vadd.f32 %v408, %v413
        %v418 = vadd.f32 %v409, %v413
        %v419 = vadd.f32 %v410, %v413
        %v420 = vadd.f32 %v411, %v413
        %v421 = vadd.f32 %v412, %v413
        %422 = vst [vmem:[%s356] sm:$0xff] %v414
        %423 = vst [vmem:[%s356 + $0x8] sm:$0xff] %v415
        %424 = vst [vmem:[%s356 + $0x10] sm:$0xff] %v416
        %425 = vst [vmem:[%s356 + $0x18] sm:$0xff] %v417
        %426 = vst [vmem:[%s356 + $0x20] sm:$0xff] %v418
        %427 = vst [vmem:[%s356 + $0x28] sm:$0xff] %v419
        %428 = vst [vmem:[%s356 + $0x30] sm:$0xff] %v420
        %429 = vst [vmem:[%s356 + $0x38] sm:$0xff] %v421
        %s430 = sand.u32 %s95, 1
        %s431 = scalar_lea.sflag [#allocation4], %s430
        %s432 = sand.u32 %s95, 1
        %s433 = smul.addr %s432, 64
        %s434 = scalar_lea.vmem [#allocation7], %s433
        // Predicated region
        $region89: #{tpu_custom_call.1} parent=79 // pred_check
          %p435 = pneg %p105
        $region90: #{tpu_custom_call.1} parent=79 // pred_check_branch
          %437 = sbr.rel (%p435) target = $region92
        $region91: #{tpu_custom_call.1} parent=79 // pred_region
          %s438 = smul.u32 8, %s19
          %s439 = ssub.s32 25, %s438
          %p440 = scmp.lt.s32.totalorder %s439, 8
          %s441 = scalar_select %p440, %s439, 8
          %s442 = smul.u32 128, %s441
          %s444 = ssub.s32 1024, %s442
          %445 = vsyncadd %s431, %s444
          %p446 = scmp.ne.s32.totalorder 0, %s442
          %s447 = smul.addr %s438, 128
          %s448 = scalar_lea.hbm %s3, %s447
          %s449 = smul.u32 8, %s441
          %s450 = sshll.u32 %s434, 4
          %s451 = int_to_ptr.vmem [resolvable:$true] %s450
          %s452 = sshll.u32 %s449, 4
          %456 = dma.vmem_to_hbm [thread:$0]  (%p446), %s451, %s452, %s448, %s431, 128, 128, 8
        $region92: #{tpu_custom_call.1} parent=79 // pred_fallthru
          _
      $region80: #{tpu_custom_call.1} parent=5 // pred_fallthru
        _
      %p457 = scmp.le.s32.totalorder 2, %s14
      // Predicated region
      $region93: #{tpu_custom_call.1} parent=5 // pred_check
        %p458 = pneg %p457
      $region94: #{tpu_custom_call.1} parent=5 // pred_check_branch
        %460 = sbr.rel (%p458) target = $region96
      $region95: #{tpu_custom_call.1} parent=5 // pred_region
        %s461 = ssub.s32 %s14, 2
        // Predicated region
        $region97: #{tpu_custom_call.1} parent=95 // pred_check
          %p462 = pneg %p111
        $region98: #{tpu_custom_call.1} parent=95 // pred_check_branch
          %464 = sbr.rel (%p462) target = $region100
        $region99: #{tpu_custom_call.1} parent=95 // pred_region
          %s465 = sand.u32 %s96, 1
          %s466 = scalar_lea.sflag [#allocation4], %s465
          %s467 = sand.u32 %s96, 1
          %s468 = smul.addr %s467, 64
          %s469 = scalar_lea.vmem [#allocation7], %s468
          %470 = dma.done %s466, 1024
        $region100: #{tpu_custom_call.1} parent=95 // pred_fallthru
          _
      $region96: #{tpu_custom_call.1} parent=5 // pred_fallthru
        _
    $region6: #{tpu_custom_call.1} parent=1 // loop_footer
      %s18 = sadd.s32 1, %s14
    $region7: #{tpu_custom_call.1} parent=1 // loop_footer_branch
      %13 = sbr.rel target = $region3
    $region8: #{tpu_custom_call.1} parent=1 // loop_exit
      _
    %471 = vsyncpa [#allocation4], 1
    %s472 = scalar_lea.sflag [#allocation4], 1
    %473 = vsyncpa %s472, 1
    %474 = vsyncpa [#allocation5], 1
    %s475 = scalar_lea.sflag [#allocation5], 1
    %476 = vsyncpa %s475, 1

</llo_original>
